<compile_context>
chip_gen: v7x
topology: tpu7x:2x2x1
jax: 0.10.0
libtpu: 0.0.40
codegen_flags: <defaults>
</compile_context>

<pallas_src>
import jax
import jax.numpy as jnp
import numpy as np
from jax.experimental import pallas as pl
from jax.experimental.pallas import tpu as pltpu


# ----------------------------------------------------------------- kernel ---

def _pool_matmul_kernel(x_ref, p_ref, o_ref):
    # x_ref: (TR, 2*G*W) grouped input rows; p_ref: (2*G*W, G*Wout) constant
    # block-diagonal pooling matrix; o_ref: (TR, G*Wout).
    # One MXU matmul does the whole pool; f32 accumulation, store in out dtype.
    o_ref[...] = jnp.dot(
        x_ref[...], p_ref[...],
        preferred_element_type=jnp.float32).astype(o_ref.dtype)


# -------------------------------------------------------------- size logic --

def _sublane_pack(itemsize):
    # rows per sublane tile: f32 -> 8, bf16 -> 16, int8/fp8 -> 32
    return max(8, 32 // max(int(itemsize), 1))


def _vmem_params():
    """(io_budget_bytes, vmem_limit_bytes), generation-gated via get_tpu_info."""
    cap = None
    try:
        cap = getattr(pltpu.get_tpu_info(), "vmem_capacity_bytes", None)
    except Exception:
        cap = None
    if not cap:
        cap = 64 * 1024 * 1024          # assume the smallest (v7x) if unknown
    io_budget = int(min(24 * 1024 * 1024, cap // 3))     # double-buffered in+out
    vmem_limit = int(min(96 * 1024 * 1024, (cap * 3) // 4))
    return io_budget, vmem_limit


def _pick_group(rows_out, w, w_out, itemsize):
    """Pooled rows packed per slab row.

    Target G*w_out >= 128 output lanes (unmasked stores).  G must divide
    rows_out (keeps the grouped reshape a free bitcast and keeps trailing
    partial grid blocks from mixing garbage into valid lanes), and the constant
    pooling matrix (2*G*W x G*w_out) is capped at ~2 MiB.
    """
    g_max = max(1, -(-128 // w_out))                       # ceil(128 / w_out)
    while g_max > 1 and 2 * g_max * g_max * w * w_out * itemsize > (2 << 20):
        g_max -= 1
    g_max = min(g_max, rows_out)
    for g in range(g_max, 0, -1):
        if rows_out % g == 0:
            return g
    return 1


def _pick_block_rows(rows_g, row_in_bytes, row_out_bytes, pack, io_budget):
    """Grouped rows per grid step, sized from the VMEM I/O budget only."""
    per_row = 2 * (row_in_bytes + row_out_bytes)           # double-buffered in+out
    max_rows = max(pack, io_budget // max(per_row, 1))
    if rows_g <= max_rows:
        # Whole slab fits in one step.  Split into >=2 steps when it is big
        # enough that megacore sharding (v7x: 2 TCs) pays for the extra step.
        if rows_g >= 2 * pack and rows_g * row_in_bytes >= 4 * 1024 * 1024:
            half = pl.cdiv(rows_g, 2)
            tr = ((half + pack - 1) // pack) * pack
            return min(tr, rows_g)
        return rows_g                                      # full-extent block
    return max(pack, (max_rows // pack) * pack)


def _pool_matrix(w, w_out, mode, groups, dtype):
    """Block-diagonal pooling matrix of shape (2*groups*w, groups*w_out)."""
    p = np.zeros((w, w_out), np.float32)
    if mode == 'timepreserve':
        p[np.arange(w), np.arange(w)] = 0.5
    else:  # 'half'
        cols = np.arange(w // 2)
        p[2 * cols, cols] = 0.25
        p[2 * cols + 1, cols] = 0.25
        if w % 2:
            p[w - 1, w_out - 1] = 0.5      # replicated last column: 0.5*(r0+r1)
    p2 = np.concatenate([p, p], axis=0)    # (2W, w_out): folds the row-pair sum
    if groups > 1:
        p2 = np.kron(np.eye(groups, dtype=np.float32), p2)
    return jnp.asarray(p2, dtype=dtype)


# ------------------------------------------------------------------- glue ---

def downsample(x, layer_type, *, block_rows=None):
    """Pallas implementation of DownSample.forward. x: (N, C, H, W)."""
    if layer_type == 'none':
        return x
    if layer_type not in ('timepreserve', 'half'):
        raise RuntimeError(
            'Got unexpected donwsampletype %s, expected is [none, timepreserve, half]'
            % layer_type)

    N, C, H, W = x.shape
    Hout = H // 2
    if H % 2:
        # TODO(synk): odd H forces a materialized slice (one extra HBM
        # read+write of x) before the flattening reshape; even H is copy-free.
        x = x[:, :, : 2 * Hout, :]
    w_out = W if layer_type == 'timepreserve' else (W + 1) // 2

    rows_out = N * C * Hout
    itemsize = x.dtype.itemsize
    pack = _sublane_pack(itemsize)
    io_budget, vmem_limit = _vmem_params()

    G = _pick_group(rows_out, W, w_out, itemsize)
    rows_g = rows_out // G
    kin = 2 * G * W                     # grouped input row width (lanes)
    nout = G * w_out                    # grouped output row width (lanes)

    x2 = x.reshape(rows_g, kin)         # contiguous reshape: no data movement
    P = _pool_matrix(W, w_out, layer_type, G, x.dtype)

    tr = block_rows
    if tr is None:
        tr = _pick_block_rows(rows_g, kin * itemsize, nout * itemsize,
                              pack, io_budget)

    cost = pl.CostEstimate(
        flops=int(2 * rows_g * kin * nout),
        transcendentals=0,
        bytes_accessed=int((rows_g * (kin + nout) + P.size) * itemsize))

    out = pl.pallas_call(
        _pool_matmul_kernel,
        out_shape=jax.ShapeDtypeStruct((rows_g, nout), x.dtype),
        grid=(pl.cdiv(rows_g, tr),),
        in_specs=[
            pl.BlockSpec((tr, kin), lambda i: (i, 0)),
            pl.BlockSpec((kin, nout), lambda i: (0, 0)),   # resident constant
        ],
        out_specs=pl.BlockSpec((tr, nout), lambda i: (i, 0)),
        compiler_params=pltpu.CompilerParams(
            dimension_semantics=("parallel",),
            vmem_limit_bytes=vmem_limit),
        cost_estimate=cost,
    )(x2, P)
    return out.reshape(N, C, Hout, w_out)


# -------------------------------------------------------------- reference ---

def _ref_downsample(x, layer_type):
    if layer_type == 'none':
        return x
    if layer_type == 'timepreserve':
        N, C, H, W = x.shape
        Hc = (H // 2) * 2
        return x[:, :, :Hc, :].reshape(N, C, H // 2, 2, W).mean(axis=3)
    if layer_type == 'half':
        if x.shape[-1] % 2 != 0:
            x = jnp.concatenate([x, x[..., -1:]], axis=-1)
        N, C, H, W = x.shape
        Hc = (H // 2) * 2
        return x[:, :, :Hc, :].reshape(N, C, H // 2, 2, W // 2, 2).mean(axis=(3, 5))
    raise RuntimeError(layer_type)


# ------------------------------------------------------------------- main ---

if __name__ == "__main__":
    key = jax.random.PRNGKey(0)
    k1, k2, k3, k4 = jax.random.split(key, 4)

    x_even = jax.random.normal(k1, (2, 4, 16, 16), dtype=jnp.float32)
    x_odd_w = jax.random.normal(k2, (2, 4, 16, 15), dtype=jnp.float32)  # odd W
    x_odd_h = jax.random.normal(k3, (2, 4, 15, 16), dtype=jnp.float32)  # odd H
    x_med = jax.random.normal(k4, (2, 4, 40, 16), dtype=jnp.float32)    # multi-block

    # 'none'
    y_none = jax.block_until_ready(downsample(x_even, 'none'))
    np.testing.assert_allclose(np.asarray(y_none), np.asarray(x_even))

    # 'timepreserve'
    y_tp = jax.block_until_ready(downsample(x_even, 'timepreserve'))
    np.testing.assert_allclose(
        np.asarray(y_tp), np.asarray(_ref_downsample(x_even, 'timepreserve')),
        rtol=1e-5, atol=1e-5)

    # 'timepreserve' with odd H (avg_pool floor semantics)
    y_tp_oh = jax.block_until_ready(downsample(x_odd_h, 'timepreserve'))
    np.testing.assert_allclose(
        np.asarray(y_tp_oh), np.asarray(_ref_downsample(x_odd_h, 'timepreserve')),
        rtol=1e-5, atol=1e-5)

    # 'half' (even W)
    y_half = jax.block_until_ready(downsample(x_even, 'half'))
    np.testing.assert_allclose(
        np.asarray(y_half), np.asarray(_ref_downsample(x_even, 'half')),
        rtol=1e-5, atol=1e-5)

    # 'half' (odd W -> replication folded into P, no concat)
    y_half_ow = jax.block_until_ready(downsample(x_odd_w, 'half'))
    np.testing.assert_allclose(
        np.asarray(y_half_ow), np.asarray(_ref_downsample(x_odd_w, 'half')),
        rtol=1e-5, atol=1e-5)

    # 'half' (odd H)
    y_half_oh = jax.block_until_ready(downsample(x_odd_h, 'half'))
    np.testing.assert_allclose(
        np.asarray(y_half_oh), np.asarray(_ref_downsample(x_odd_h, 'half')),
        rtol=1e-5, atol=1e-5)

    # Forced small tile -> multi-step grid with a partial trailing block,
    # exercising the masked-row path of the grouped formulation.
    y_half_mb = jax.block_until_ready(downsample(x_med, 'half', block_rows=8))
    np.testing.assert_allclose(
        np.asarray(y_half_mb), np.asarray(_ref_downsample(x_med, 'half')),
        rtol=1e-5, atol=1e-5)
    y_tp_mb = jax.block_until_ready(downsample(x_med, 'timepreserve', block_rows=8))
    np.testing.assert_allclose(
        np.asarray(y_tp_mb), np.asarray(_ref_downsample(x_med, 'timepreserve')),
        rtol=1e-5, atol=1e-5)

    print("KERNEL_OK")
</pallas_src>

<mosaic_0001>
module attributes {stable_mosaic.version = 11 : i64} {
  func.func @_pool_matmul_kernel(%arg0: i32, %arg1: memref<8x256xf32, #tpu.memory_space<vmem>>, %arg2: memref<256x128xf32, #tpu.memory_space<vmem>>, %arg3: memref<8x128xf32, #tpu.memory_space<vmem>>) attributes {dimension_semantics = [#tpu.dimension_semantics<parallel>], iteration_bounds = array<i64: 1>, scalar_prefetch = 0 : i64, scratch_operands = 0 : i64, tpu.core_type = #tpu.core_type<tc>, window_params = [{transform_indices = @transform_0, window_bounds = array<i64: 8, 256>}, {pipeline_mode = #tpu.pipeline_mode<synchronous>, transform_indices = @transform_1, window_bounds = array<i64: 256, 128>}, {transform_indices = @transform_2, window_bounds = array<i64: 8, 128>}]} {
    %c0 = arith.constant 0 : index
    %c0_0 = arith.constant 0 : index
    %0 = vector.load %arg1[%c0, %c0_0] : memref<8x256xf32, #tpu.memory_space<vmem>>, vector<8x256xf32>
    %c0_1 = arith.constant 0 : index
    %c0_2 = arith.constant 0 : index
    %1 = vector.load %arg2[%c0_1, %c0_2] : memref<256x128xf32, #tpu.memory_space<vmem>>, vector<256x128xf32>
    %cst = arith.constant dense<0.000000e+00> : vector<8x128xf32>
    %2 = tpu.matmul %0, %1, %cst {dimension_numbers = #tpu.dot_dimension_numbers<[1], [0], [0], [1], [0, 0, 1, 1], [], []>} : vector<8x256xf32>, vector<256x128xf32>, vector<8x128xf32> -> vector<8x128xf32>
    %c0_3 = arith.constant 0 : index
    %c0_4 = arith.constant 0 : index
    %3 = vector.load %arg3[%c0_3, %c0_4] : memref<8x128xf32, #tpu.memory_space<vmem>>, vector<8x128xf32>
    tpu.vector_store %arg3[%c0_3, %c0_4], %2 {strides = array<i32>} : memref<8x128xf32, #tpu.memory_space<vmem>>, vector<8x128xf32>,
    return
  }
  func.func @transform_0(%arg0: i32) -> (i32, i32) {
    %c0_i32 = arith.constant 0 : i32
    %c0_i32_0 = arith.constant 0 : i32
    return %arg0, %c0_i32 : i32, i32
  }
  func.func @transform_1(%arg0: i32) -> (i32, i32) {
    %c0_i32 = arith.constant 0 : i32
    %c0_i32_0 = arith.constant 0 : i32
    %c0_i32_1 = arith.constant 0 : i32
    return %c0_i32, %c0_i32_0 : i32, i32
  }
  func.func @transform_2(%arg0: i32) -> (i32, i32) {
    %c0_i32 = arith.constant 0 : i32
    %c0_i32_0 = arith.constant 0 : i32
    return %arg0, %c0_i32 : i32, i32
  }
}

</mosaic_0001>

<llo_original>
// kernel: tpu_custom_call.1
$region0: #{tpu_custom_call.1}
  #allocation0 [shape = 'u32[]', space=smem, size = 0x4, offset = 0x4, fixed_abs, tag = 'smem constant byte address 0x4 - core index']
  #allocation1 [shape = 'u32[144,128]{1,0:T(1,128)}', space=vmem, size = 0x12000, scoped, tag = 'internal scratch']
  %s0 = inlined_call_operand.hbm [shape: f32[8,256], index: 0, kind: input, shape index: {}]
  %s1 = inlined_call_operand.hbm [shape: f32[256,128], index: 1, kind: input, shape index: {}]
  %s2 = inlined_call_operand.hbm [shape: f32[8,128], index: 2, kind: output, shape index: {}]
  %s3 = sld [smem:[#allocation0]]
  $region26: #{tpu_custom_call.1} parent=0
    _
  %s5 = ssub.s32 1, %s3
  %s6 = scalar_select 0, %s5, %s3
  $region1: #{tpu_custom_call.1} parent=0
    #allocation2 [shape = 'u8[8192]{0}', space=vmem, size = 0x2000, scoped, tag = 'input window, operand 0, single buffered']
    #allocation3 [shape = 's32[1]{0}', space=sflag, size = 0x4, scoped, tag = 'scoped memory for tpu_custom_call.1']
    #allocation4 [shape = 's32[1]{0}', space=sflag, size = 0x4, scoped, tag = 'scoped memory for tpu_custom_call.1']
    #allocation5 [shape = 'u8[131072]{0}', space=vmem, size = 0x20000, scoped, tag = 'input window, operand 1, single buffered']
    #allocation6 [shape = 's32[1]{0}', space=sflag, size = 0x4, scoped, tag = 'scoped memory for tpu_custom_call.1']
    #allocation7 [shape = 'u8[4096]{0}', space=vmem, size = 0x1000, scoped, tag = 'output window, operand 0, single buffered']
    %7 = vsyncpa [#allocation3], 0
    %8 = vsyncpa [#allocation6], 0
    %9 = vsyncpa [#allocation4], 0
    // Predicated region
    $region2: #{tpu_custom_call.1} parent=1 // pred_check
      _
    $region3: #{tpu_custom_call.1} parent=1 // pred_check_branch
      %11 = sbr.rel (0) target = $region5
    $region4: #{tpu_custom_call.1} parent=1 // pred_region
      %s13 = ssub.s32 256, 256
      %14 = vsyncadd [#allocation3], %s13
      %s16 = sshll.u32 [#allocation2], 4
      %s17 = int_to_ptr.vmem [resolvable:$true] %s16
      %19 = dma.hbm_to_vmem [thread:$0]  %s0, 256, %s17, [#allocation3]
    $region5: #{tpu_custom_call.1} parent=1 // pred_fallthru
      _
    // Predicated region
    $region6: #{tpu_custom_call.1} parent=1 // pred_check
      _
    $region7: #{tpu_custom_call.1} parent=1 // pred_check_branch
      %21 = sbr.rel (0) target = $region9
    $region8: #{tpu_custom_call.1} parent=1 // pred_region
      %s23 = ssub.s32 4096, 4096
      %24 = vsyncadd [#allocation6], %s23
      %s25 = sshll.u32 [#allocation5], 4
      %s26 = int_to_ptr.vmem [resolvable:$true] %s25
      %31 = dma.hbm_to_vmem [thread:$0]  %s1, 4096, %s26, [#allocation6], 128, 128, 8
    $region9: #{tpu_custom_call.1} parent=1 // pred_fallthru
      _
    // Predicated region
    $region10: #{tpu_custom_call.1} parent=1 // pred_check
      _
    $region11: #{tpu_custom_call.1} parent=1 // pred_check_branch
      %33 = sbr.rel (0) target = $region13
    $region12: #{tpu_custom_call.1} parent=1 // pred_region
      %34 = dma.done [#allocation3], 256
    $region13: #{tpu_custom_call.1} parent=1 // pred_fallthru
      _
    // Predicated region
    $region14: #{tpu_custom_call.1} parent=1 // pred_check
      _
    $region15: #{tpu_custom_call.1} parent=1 // pred_check_branch
      %36 = sbr.rel (0) target = $region17
    $region16: #{tpu_custom_call.1} parent=1 // pred_region
      %37 = dma.done [#allocation6], 4096
    $region17: #{tpu_custom_call.1} parent=1 // pred_fallthru
      _
    %v38 = vld [vmem:[#allocation2] sm:$0xff]
    %v39 = vld [vmem:[#allocation2 + $0x8] sm:$0xff]
    %v40 = vld [vmem:[#allocation5] sm:$0xff]
    %v41 = vld [vmem:[#allocation5 + $0x8] sm:$0xff]
    %v42 = vld [vmem:[#allocation5 + $0x10] sm:$0xff]
    %v43 = vld [vmem:[#allocation5 + $0x18] sm:$0xff]
    %v44 = vld [vmem:[#allocation5 + $0x20] sm:$0xff]
    %v45 = vld [vmem:[#allocation5 + $0x28] sm:$0xff]
    %v46 = vld [vmem:[#allocation5 + $0x30] sm:$0xff]
    %v47 = vld [vmem:[#allocation5 + $0x38] sm:$0xff]
    %v48 = vld [vmem:[#allocation5 + $0x40] sm:$0xff]
    %v49 = vld [vmem:[#allocation5 + $0x48] sm:$0xff]
    %v50 = vld [vmem:[#allocation5 + $0x50] sm:$0xff]
    %v51 = vld [vmem:[#allocation5 + $0x58] sm:$0xff]
    %v52 = vld [vmem:[#allocation5 + $0x60] sm:$0xff]
    %v53 = vld [vmem:[#allocation5 + $0x68] sm:$0xff]
    %v54 = vld [vmem:[#allocation5 + $0x70] sm:$0xff]
    %v55 = vld [vmem:[#allocation5 + $0x78] sm:$0xff]
    %v56 = vld [vmem:[#allocation5 + $0x80] sm:$0xff]
    %v57 = vld [vmem:[#allocation5 + $0x88] sm:$0xff]
    %v58 = vld [vmem:[#allocation5 + $0x90] sm:$0xff]
    %v59 = vld [vmem:[#allocation5 + $0x98] sm:$0xff]
    %v60 = vld [vmem:[#allocation5 + $0xa0] sm:$0xff]
    %v61 = vld [vmem:[#allocation5 + $0xa8] sm:$0xff]
    %v62 = vld [vmem:[#allocation5 + $0xb0] sm:$0xff]
    %v63 = vld [vmem:[#allocation5 + $0xb8] sm:$0xff]
    %v64 = vld [vmem:[#allocation5 + $0xc0] sm:$0xff]
    %v65 = vld [vmem:[#allocation5 + $0xc8] sm:$0xff]
    %v66 = vld [vmem:[#allocation5 + $0xd0] sm:$0xff]
    %v67 = vld [vmem:[#allocation5 + $0xd8] sm:$0xff]
    %v68 = vld [vmem:[#allocation5 + $0xe0] sm:$0xff]
    %v69 = vld [vmem:[#allocation5 + $0xe8] sm:$0xff]
    %v70 = vld [vmem:[#allocation5 + $0xf0] sm:$0xff]
    %v71 = vld [vmem:[#allocation5 + $0xf8] sm:$0xff]
    %72 = vmatprep.subr.mxu0 0.0
    %73 = vmatpush1.msra.mxu0 %v40
    %74 = vmatprep.subr.mxu0 0.0
    %75 = vmatpush1.msra.mxu0 %v41
    %76 = vmatprep.subr.mxu0 0.0
    %77 = vmatpush1.msra.mxu0 %v42
    %78 = vmatprep.subr.mxu0 0.0
    %79 = vmatpush1.msra.mxu0 %v43
    %80 = vmatprep.subr.mxu0 0.0
    %81 = vmatpush1.msra.mxu0 %v44
    %82 = vmatprep.subr.mxu0 0.0
    %83 = vmatpush1.msra.mxu0 %v45
    %84 = vmatprep.subr.mxu0 0.0
    %85 = vmatpush1.msra.mxu0 %v46
    %86 = vmatprep.subr.mxu0 0.0
    %87 = vmatpush1.msra.mxu0 %v47
    %88 = vmatprep.subr.mxu0 0.0
    %89 = vmatpush1.msra.mxu0 %v48
    %90 = vmatprep.subr.mxu0 0.0
    %91 = vmatpush1.msra.mxu0 %v49
    %92 = vmatprep.subr.mxu0 0.0
    %93 = vmatpush1.msra.mxu0 %v50
    %94 = vmatprep.subr.mxu0 0.0
    %95 = vmatpush1.msra.mxu0 %v51
    %96 = vmatprep.subr.mxu0 0.0
    %97 = vmatpush1.msra.mxu0 %v52
    %98 = vmatprep.subr.mxu0 0.0
    %99 = vmatpush1.msra.mxu0 %v53
    %100 = vmatprep.subr.mxu0 0.0
    %101 = vmatpush1.msra.mxu0 %v54
    %102 = vmatprep.subr.mxu0 0.0
    %103 = vmatpush1.msra.mxu0 %v55
    %104 = vmatprep.subr.mxu0 0.0
    %105 = vmatpush1.msra.mxu0 %v56
    %106 = vmatprep.subr.mxu0 0.0
    %107 = vmatpush1.msra.mxu0 %v57
    %108 = vmatprep.subr.mxu0 0.0
    %109 = vmatpush1.msra.mxu0 %v58
    %110 = vmatprep.subr.mxu0 0.0
    %111 = vmatpush1.msra.mxu0 %v59
    %112 = vmatprep.subr.mxu0 0.0
    %113 = vmatpush1.msra.mxu0 %v60
    %114 = vmatprep.subr.mxu0 0.0
    %115 = vmatpush1.msra.mxu0 %v61
    %116 = vmatprep.subr.mxu0 0.0
    %117 = vmatpush1.msra.mxu0 %v62
    %118 = vmatprep.subr.mxu0 0.0
    %119 = vmatpush1.msra.mxu0 %v63
    %120 = vmatprep.subr.mxu0 0.0
    %121 = vmatpush1.msra.mxu0 %v64
    %122 = vmatprep.subr.mxu0 0.0
    %123 = vmatpush1.msra.mxu0 %v65
    %124 = vmatprep.subr.mxu0 0.0
    %125 = vmatpush1.msra.mxu0 %v66
    %126 = vmatprep.subr.mxu0 0.0
    %127 = vmatpush1.msra.mxu0 %v67
    %128 = vmatprep.subr.mxu0 0.0
    %129 = vmatpush1.msra.mxu0 %v68
    %130 = vmatprep.subr.mxu0 0.0
    %131 = vmatpush1.msra.mxu0 %v69
    %132 = vmatprep.subr.mxu0 0.0
    %133 = vmatpush1.msra.mxu0 %v70
    %134 = vmatprep.subr.mxu0 0.0
    %135 = vmatpush1.msra.mxu0 %v71
    %136 = vmatprep.mubr.f32.mxu0 %v39
    %137 = vmatmul.mubr.f32.gmra.mrb[0].mxu0 %v38
    %v138 = vpop.f32.mrb[0].mxu0
    %v139 = vadd.f32 0.0, %v138
    %v140 = vpop.f32.mrb[0].mxu0
    %141 = vdwg.mxu0
    %142 = vst [vmem:[#allocation7] sm:$0xff] %v139
    // Predicated region
    $region18: #{tpu_custom_call.1} parent=1 // pred_check
      _
    $region19: #{tpu_custom_call.1} parent=1 // pred_check_branch
      %144 = sbr.rel (0) target = $region21
    $region20: #{tpu_custom_call.1} parent=1 // pred_region
      %s146 = ssub.s32 128, 128
      %147 = vsyncadd [#allocation4], %s146
      %s149 = sshll.u32 [#allocation7], 4
      %s150 = int_to_ptr.vmem [resolvable:$true] %s149
      %152 = dma.vmem_to_hbm [thread:$0]  %s150, 128, %s2, [#allocation4]
    $region21: #{tpu_custom_call.1} parent=1 // pred_fallthru
      _
    // Predicated region
    $region22: #{tpu_custom_call.1} parent=1 // pred_check
      _
    $region23: #{tpu_custom_call.1} parent=1 // pred_check_branch
      %154 = sbr.rel (0) target = $region25
    $region24: #{tpu_custom_call.1} parent=1 // pred_region
      %155 = dma.done [#allocation4], 128
    $region25: #{tpu_custom_call.1} parent=1 // pred_fallthru
      _
    %156 = vsyncpa [#allocation3], 1
    %157 = vsyncpa [#allocation6], 1
    %158 = vsyncpa [#allocation4], 1

</llo_original>
